<compile_context>
chip_gen: v7x
topology: tpu7x:2x2x1
jax: 0.10.0
libtpu: 0.0.40
codegen_flags: <defaults>
</compile_context>

<pallas_src>
import functools

import jax
import jax.numpy as jnp
from jax.experimental import pallas as pl
from jax.experimental.pallas import tpu as pltpu


def _round_up(x: int, m: int) -> int:
    return (x + m - 1) // m * m


def _fused_multiheads_kernel(x_ref, w0_ref, b0_ref, *refs,
                             num_layers: int, n_heads: int,
                             hid0_pad: int, d_out_pad: int):
    """One (tm, d_in) tile through every layer of every head, fully in VMEM.

    refs = (w_1, b_1, ..., w_{L-1}, b_{L-1}, out_ref)
      w0_ref : (d_in_pad, n_heads*hid0_pad)   all heads' layer-0 weights, fused
      b0_ref : (1, n_heads*hid0_pad)
      w_l    : (n_heads, in_pad, out_pad)
      b_l    : (n_heads, 1, out_pad)
      out_ref: (tm, n_heads*d_out_pad)        lane-dense slab, one 128*k block per head
    """
    out_ref = refs[-1]
    w_refs = refs[0:2 * (num_layers - 1):2]
    b_refs = refs[1:2 * (num_layers - 1):2]

    x = x_ref[...]                                  # native dtype -> native-rate MXU
    # Layer 0 fused across heads: one wide matmul fills the MXU N dimension.
    h_all = jnp.dot(x, w0_ref[...], preferred_element_type=jnp.float32)
    h_all = h_all + b0_ref[...].astype(jnp.float32)

    if num_layers == 1:
        out_ref[...] = h_all.astype(out_ref.dtype)
        return

    for h in range(n_heads):                        # static unroll; H is small
        a = h_all[:, h * hid0_pad:(h + 1) * hid0_pad].astype(x.dtype)
        for l in range(num_layers - 1):
            a = jnp.maximum(a, 0.0)                 # activation precedes every Linear but the first
            w = w_refs[l][h]                        # (in_pad, out_pad)
            b = b_refs[l][h]                        # (1, out_pad)
            a = jnp.dot(a, w, preferred_element_type=jnp.float32)
            a = a + b.astype(jnp.float32)
            if l + 1 < num_layers - 1:
                a = a.astype(x.dtype)               # keep operands native for the next matmul
        out_ref[:, h * d_out_pad:(h + 1) * d_out_pad] = a.astype(out_ref.dtype)


def _fused_multi_head_mlp(x, w0_all, b0_all, stacked_ws, stacked_bs, *,
                          n_heads, hid0_pad, d_out_pad, block_m=512):
    """x: (N, d_in_pad). Returns (N_pad, n_heads*d_out_pad), one lane-dense block per head."""
    n, d_in = x.shape
    num_layers = 1 + len(stacked_ws)
    itemsize = x.dtype.itemsize

    row_tile = 8 if itemsize >= 4 else 16           # bf16/fp8 pack 16 rows per sublane group
    tm = min(block_m, _round_up(n, row_tile))
    # Give a 2-TensorCore chip (v7x) at least two m-tiles when possible.
    if _round_up(n, tm) // tm < 2 and tm > row_tile:
        half = _round_up((tm + 1) // 2, row_tile)
        if _round_up(n, half) // half >= 2:
            tm = half
    n_pad = _round_up(n, tm)
    if n_pad != n:
        x = jnp.pad(x, ((0, n_pad - n), (0, 0)))

    grid = (n_pad // tm,)

    in_specs = [
        pl.BlockSpec((tm, d_in), lambda m: (m, 0)),
        # Constant block index -> all-head weights are DMA'd once and stay resident.
        pl.BlockSpec(w0_all.shape, lambda m: (0, 0)),
        pl.BlockSpec(b0_all.shape, lambda m: (0, 0)),
    ]
    operands = [x, w0_all, b0_all]
    for w, b in zip(stacked_ws, stacked_bs):
        in_specs.append(pl.BlockSpec(w.shape, lambda m: (0, 0, 0)))
        in_specs.append(pl.BlockSpec(b.shape, lambda m: (0, 0, 0)))
        operands.extend([w, b])

    out_lanes = n_heads * d_out_pad
    out_spec = pl.BlockSpec((tm, out_lanes), lambda m: (m, 0))

    weight_bytes = sum(int(a.size) * a.dtype.itemsize
                       for a in ([w0_all, b0_all] + list(stacked_ws) + list(stacked_bs)))
    flops = 2 * n_pad * (d_in * int(w0_all.shape[1])
                         + n_heads * sum(int(w.shape[1]) * int(w.shape[2]) for w in stacked_ws))
    bytes_accessed = (n_pad * d_in * itemsize            # x read once (heads folded in)
                      + weight_bytes                     # weights read once
                      + n_pad * out_lanes * itemsize)    # output written once

    # VMEM budget: double-buffered x/out tiles + (double-buffered) resident weights
    # + f32 intermediates.  Clamp to [32 MiB, 64 MiB]: v5e's scoped default is only
    # 16 MiB, v7x's physical VMEM is 64 MiB.
    max_width = max([int(w0_all.shape[1]), out_lanes]
                    + [int(w.shape[2]) for w in stacked_ws])
    vmem_needed = (2 * weight_bytes
                   + 2 * tm * d_in * itemsize
                   + 2 * tm * out_lanes * itemsize
                   + 4 * tm * max_width * 4)
    vmem_limit = int(min(64 * 2**20, max(32 * 2**20, int(vmem_needed * 1.25))))

    kernel = functools.partial(
        _fused_multiheads_kernel, num_layers=num_layers, n_heads=n_heads,
        hid0_pad=hid0_pad, d_out_pad=d_out_pad)

    return pl.pallas_call(
        kernel,
        out_shape=jax.ShapeDtypeStruct((n_pad, out_lanes), x.dtype),
        grid=grid,
        in_specs=in_specs,
        out_specs=out_spec,
        compiler_params=pltpu.CompilerParams(
            dimension_semantics=("parallel",),
            vmem_limit_bytes=vmem_limit),
        cost_estimate=pl.CostEstimate(
            flops=flops, transcendentals=0, bytes_accessed=bytes_accessed),
    )(*operands)


def multi_readout_forward(a_hidden, head_params, *, output_size, block_m=512):
    """MultiReadout forward for atom-type heads (no constraint / attention).

    head_params: list over heads of (weights, biases); weights[l]: (in_l, out_l),
    biases[l]: (1, out_l). All heads share the same layer architecture.
    Returns a list (one entry per head) of (N-1, output_size) arrays — row 0
    (the chemprop zero-padding atom) is dropped, matching FFN's `output[1:]`.
    """
    n_heads = len(head_params)
    num_layers = len(head_params[0][0])

    x = a_hidden
    n, d_in = x.shape
    row_tile = 8 if x.dtype.itemsize >= 4 else 16

    # Pad layer-0's contraction dim if needed (zero cols in x, zero rows in W0).
    d_in_pad = _round_up(d_in, row_tile)
    if d_in_pad != d_in:
        x = jnp.pad(x, ((0, 0), (0, d_in_pad - d_in)))

    d_out_pad = _round_up(output_size, 128)          # lane-dense output stores

    # Lane-pad every layer's output width to 128 so all matmuls / intermediate
    # activations stay lane-dense (padded columns are exactly zero end-to-end).
    layer_out = [int(w.shape[1]) for w in head_params[0][0]]
    layer_out_pad = [_round_up(o, 128) for o in layer_out[:-1]] + [d_out_pad]
    layer_in = [d_in_pad] + layer_out_pad[:-1]

    def pad_wb(w, b, in_pad, out_pad):
        w = jnp.pad(w, ((0, in_pad - w.shape[0]), (0, out_pad - w.shape[1])))
        b = jnp.pad(b, ((0, 0), (0, out_pad - b.shape[1])))
        return w, b

    # Layer 0: concatenate all heads along the output axis -> one wide matmul.
    w0s, b0s = [], []
    for h in range(n_heads):
        w, b = pad_wb(head_params[h][0][0], head_params[h][1][0],
                      layer_in[0], layer_out_pad[0])
        w0s.append(w)
        b0s.append(b)
    w0_all = jnp.concatenate(w0s, axis=1)            # (d_in_pad, H*hid0_pad)
    b0_all = jnp.concatenate(b0s, axis=1)            # (1, H*hid0_pad)

    stacked_ws, stacked_bs = [], []
    for l in range(1, num_layers):
        ws, bs = [], []
        for h in range(n_heads):
            w, b = pad_wb(head_params[h][0][l], head_params[h][1][l],
                          layer_in[l], layer_out_pad[l])
            ws.append(w)
            bs.append(b)
        stacked_ws.append(jnp.stack(ws))             # (H, in_pad, out_pad)
        stacked_bs.append(jnp.stack(bs))             # (H, 1, out_pad)

    out = _fused_multi_head_mlp(
        x, w0_all, b0_all, stacked_ws, stacked_bs,
        n_heads=n_heads, hid0_pad=layer_out_pad[0], d_out_pad=d_out_pad,
        block_m=block_m)                             # (N_pad, H*d_out_pad)

    # Single fused trim (drop padding row 0 + lane padding), then unbind per head.
    trimmed = out[1:n].reshape(n - 1, n_heads, d_out_pad)[:, :, :output_size]
    return [trimmed[:, h] for h in range(n_heads)]


def init_dense_layers_params(key, first_linear_dim, hidden_size, num_layers,
                             output_size, dtype=jnp.float32):
    """torch.nn.Linear-style init: U(-1/sqrt(in), 1/sqrt(in)); W stored as (in, out)."""
    if num_layers == 1:
        dims = [(first_linear_dim, output_size)]
    else:
        dims = [(first_linear_dim, hidden_size)]
        dims += [(hidden_size, hidden_size)] * (num_layers - 2)
        dims += [(hidden_size, output_size)]

    weights, biases = [], []
    for (d_in, d_out) in dims:
        key, kw, kb = jax.random.split(key, 3)
        bound = 1.0 / jnp.sqrt(jnp.asarray(d_in, jnp.float32))
        weights.append(jax.random.uniform(kw, (d_in, d_out), dtype, -bound, bound))
        biases.append(jax.random.uniform(kb, (1, d_out), dtype, -bound, bound))
    return weights, biases


def _reference_multi_readout(a_hidden, head_params):
    outs = []
    for weights, biases in head_params:
        h = a_hidden
        for i, (w, b) in enumerate(zip(weights, biases)):
            if i > 0:
                h = jnp.maximum(h, 0.0)
            h = h @ w + b
        outs.append(h[1:])                           # FFN atom path drops the padding row
    return outs


if __name__ == "__main__":
    # Small, module-consistent shapes.
    n_atoms = 9            # includes the zero-padding atom at row 0
    features_size = 32     # args.hidden_size
    ffn_hidden_size = 32
    ffn_num_layers = 3
    output_size = 16
    n_atom_targets = 2     # number of readout heads

    key = jax.random.PRNGKey(0)
    key, kx = jax.random.split(key)
    a_hidden = jax.random.normal(kx, (n_atoms, features_size), jnp.float32)

    head_params = []
    for _ in range(n_atom_targets):
        key, sub = jax.random.split(key)
        head_params.append(init_dense_layers_params(
            sub, features_size, ffn_hidden_size, ffn_num_layers, output_size))

    outs = multi_readout_forward(a_hidden, head_params, output_size=output_size)
    outs = jax.block_until_ready(outs)

    refs = _reference_multi_readout(a_hidden, head_params)
    assert len(outs) == n_atom_targets
    for o, r in zip(outs, refs):
        assert o.shape == (n_atoms - 1, output_size), o.shape
        assert jnp.allclose(o, r, atol=1e-5, rtol=1e-5), "mismatch vs reference"

    print("KERNEL_OK")
</pallas_src>

<mosaic_0001>
module attributes {stable_mosaic.version = 11 : i64} {
  func.func @_fused_multiheads_kernel(%arg0: i32, %arg1: memref<8x32xf32, #tpu.memory_space<vmem>>, %arg2: memref<32x256xf32, #tpu.memory_space<vmem>>, %arg3: memref<1x256xf32, #tpu.memory_space<vmem>>, %arg4: memref<2x128x128xf32, #tpu.memory_space<vmem>>, %arg5: memref<2x1x128xf32, #tpu.memory_space<vmem>>, %arg6: memref<2x128x128xf32, #tpu.memory_space<vmem>>, %arg7: memref<2x1x128xf32, #tpu.memory_space<vmem>>, %arg8: memref<8x256xf32, #tpu.memory_space<vmem>>) attributes {dimension_semantics = [#tpu.dimension_semantics<parallel>], iteration_bounds = array<i64: 2>, scalar_prefetch = 0 : i64, scratch_operands = 0 : i64, tpu.core_type = #tpu.core_type<tc>, window_params = [{transform_indices = @transform_0, window_bounds = array<i64: 8, 32>}, {pipeline_mode = #tpu.pipeline_mode<synchronous>, transform_indices = @transform_1, window_bounds = array<i64: 32, 256>}, {pipeline_mode = #tpu.pipeline_mode<synchronous>, transform_indices = @transform_2, window_bounds = array<i64: 1, 256>}, {pipeline_mode = #tpu.pipeline_mode<synchronous>, transform_indices = @transform_3, window_bounds = array<i64: 2, 128, 128>}, {pipeline_mode = #tpu.pipeline_mode<synchronous>, transform_indices = @transform_4, window_bounds = array<i64: 2, 1, 128>}, {pipeline_mode = #tpu.pipeline_mode<synchronous>, transform_indices = @transform_5, window_bounds = array<i64: 2, 128, 128>}, {pipeline_mode = #tpu.pipeline_mode<synchronous>, transform_indices = @transform_6, window_bounds = array<i64: 2, 1, 128>}, {transform_indices = @transform_7, window_bounds = array<i64: 8, 256>}]} {
    %c0 = arith.constant 0 : index
    %c0_0 = arith.constant 0 : index
    %0 = vector.load %arg1[%c0, %c0_0] : memref<8x32xf32, #tpu.memory_space<vmem>>, vector<8x32xf32>
    %c0_1 = arith.constant 0 : index
    %c0_2 = arith.constant 0 : index
    %1 = vector.load %arg2[%c0_1, %c0_2] : memref<32x256xf32, #tpu.memory_space<vmem>>, vector<32x256xf32>
    %cst = arith.constant dense<0.000000e+00> : vector<8x256xf32>
    %2 = tpu.matmul %0, %1, %cst {dimension_numbers = #tpu.dot_dimension_numbers<[1], [0], [0], [1], [0, 0, 1, 1], [], []>} : vector<8x32xf32>, vector<32x256xf32>, vector<8x256xf32> -> vector<8x256xf32>
    %c0_3 = arith.constant 0 : index
    %c0_4 = arith.constant 0 : index
    %3 = vector.load %arg3[%c0_3, %c0_4] : memref<1x256xf32, #tpu.memory_space<vmem>>, vector<1x256xf32>
    %4 = vector.broadcast %3 : vector<1x256xf32> to vector<8x256xf32>
    %5 = arith.addf %2, %4 : vector<8x256xf32>
    %6 = vector.extract_strided_slice %5 {offsets = [0, 0], sizes = [8, 128], strides = [1, 1]} : vector<8x256xf32> to vector<8x128xf32>
    %cst_5 = arith.constant 0.000000e+00 : f32
    %7 = vector.broadcast %cst_5 : f32 to vector<8x128xf32>
    %8 = arith.maximumf %6, %7 : vector<8x128xf32>
    %c0_6 = arith.constant 0 : index
    %c0_7 = arith.constant 0 : index
    %c0_8 = arith.constant 0 : index
    %9 = vector.load %arg4[%c0_6, %c0_7, %c0_8] : memref<2x128x128xf32, #tpu.memory_space<vmem>>, vector<1x128x128xf32>
    %10 = vector.shape_cast %9 : vector<1x128x128xf32> to vector<128x128xf32>
    %c0_9 = arith.constant 0 : index
    %c0_10 = arith.constant 0 : index
    %c0_11 = arith.constant 0 : index
    %11 = vector.load %arg5[%c0_9, %c0_10, %c0_11] : memref<2x1x128xf32, #tpu.memory_space<vmem>>, vector<1x1x128xf32>
    %12 = vector.shape_cast %11 : vector<1x1x128xf32> to vector<1x128xf32>
    %cst_12 = arith.constant dense<0.000000e+00> : vector<8x128xf32>
    %13 = tpu.matmul %8, %10, %cst_12 {dimension_numbers = #tpu.dot_dimension_numbers<[1], [0], [0], [1], [0, 0, 1, 1], [], []>} : vector<8x128xf32>, vector<128x128xf32>, vector<8x128xf32> -> vector<8x128xf32>
    %14 = vector.broadcast %12 : vector<1x128xf32> to vector<8x128xf32>
    %15 = arith.addf %13, %14 : vector<8x128xf32>
    %cst_13 = arith.constant 0.000000e+00 : f32
    %16 = vector.broadcast %cst_13 : f32 to vector<8x128xf32>
    %17 = arith.maximumf %15, %16 : vector<8x128xf32>
    %c0_14 = arith.constant 0 : index
    %c0_15 = arith.constant 0 : index
    %c0_16 = arith.constant 0 : index
    %18 = vector.load %arg6[%c0_14, %c0_15, %c0_16] : memref<2x128x128xf32, #tpu.memory_space<vmem>>, vector<1x128x128xf32>
    %19 = vector.shape_cast %18 : vector<1x128x128xf32> to vector<128x128xf32>
    %c0_17 = arith.constant 0 : index
    %c0_18 = arith.constant 0 : index
    %c0_19 = arith.constant 0 : index
    %20 = vector.load %arg7[%c0_17, %c0_18, %c0_19] : memref<2x1x128xf32, #tpu.memory_space<vmem>>, vector<1x1x128xf32>
    %21 = vector.shape_cast %20 : vector<1x1x128xf32> to vector<1x128xf32>
    %cst_20 = arith.constant dense<0.000000e+00> : vector<8x128xf32>
    %22 = tpu.matmul %17, %19, %cst_20 {dimension_numbers = #tpu.dot_dimension_numbers<[1], [0], [0], [1], [0, 0, 1, 1], [], []>} : vector<8x128xf32>, vector<128x128xf32>, vector<8x128xf32> -> vector<8x128xf32>
    %23 = vector.broadcast %21 : vector<1x128xf32> to vector<8x128xf32>
    %24 = arith.addf %22, %23 : vector<8x128xf32>
    %c0_21 = arith.constant 0 : index
    %c0_22 = arith.constant 0 : index
    %25 = vector.load %arg8[%c0_21, %c0_22] : memref<8x256xf32, #tpu.memory_space<vmem>>, vector<8x128xf32>
    tpu.vector_store %arg8[%c0_21, %c0_22], %24 {strides = array<i32>} : memref<8x256xf32, #tpu.memory_space<vmem>>, vector<8x128xf32>,
    %26 = vector.extract_strided_slice %5 {offsets = [0, 128], sizes = [8, 128], strides = [1, 1]} : vector<8x256xf32> to vector<8x128xf32>
    %cst_23 = arith.constant 0.000000e+00 : f32
    %27 = vector.broadcast %cst_23 : f32 to vector<8x128xf32>
    %28 = arith.maximumf %26, %27 : vector<8x128xf32>
    %c1 = arith.constant 1 : index
    %c0_24 = arith.constant 0 : index
    %c0_25 = arith.constant 0 : index
    %29 = vector.load %arg4[%c1, %c0_24, %c0_25] : memref<2x128x128xf32, #tpu.memory_space<vmem>>, vector<1x128x128xf32>
    %30 = vector.shape_cast %29 : vector<1x128x128xf32> to vector<128x128xf32>
    %c1_26 = arith.constant 1 : index
    %c0_27 = arith.constant 0 : index
    %c0_28 = arith.constant 0 : index
    %31 = vector.load %arg5[%c1_26, %c0_27, %c0_28] : memref<2x1x128xf32, #tpu.memory_space<vmem>>, vector<1x1x128xf32>
    %32 = vector.shape_cast %31 : vector<1x1x128xf32> to vector<1x128xf32>
    %cst_29 = arith.constant dense<0.000000e+00> : vector<8x128xf32>
    %33 = tpu.matmul %28, %30, %cst_29 {dimension_numbers = #tpu.dot_dimension_numbers<[1], [0], [0], [1], [0, 0, 1, 1], [], []>} : vector<8x128xf32>, vector<128x128xf32>, vector<8x128xf32> -> vector<8x128xf32>
    %34 = vector.broadcast %32 : vector<1x128xf32> to vector<8x128xf32>
    %35 = arith.addf %33, %34 : vector<8x128xf32>
    %cst_30 = arith.constant 0.000000e+00 : f32
    %36 = vector.broadcast %cst_30 : f32 to vector<8x128xf32>
    %37 = arith.maximumf %35, %36 : vector<8x128xf32>
    %c1_31 = arith.constant 1 : index
    %c0_32 = arith.constant 0 : index
    %c0_33 = arith.constant 0 : index
    %38 = vector.load %arg6[%c1_31, %c0_32, %c0_33] : memref<2x128x128xf32, #tpu.memory_space<vmem>>, vector<1x128x128xf32>
    %39 = vector.shape_cast %38 : vector<1x128x128xf32> to vector<128x128xf32>
    %c1_34 = arith.constant 1 : index
    %c0_35 = arith.constant 0 : index
    %c0_36 = arith.constant 0 : index
    %40 = vector.load %arg7[%c1_34, %c0_35, %c0_36] : memref<2x1x128xf32, #tpu.memory_space<vmem>>, vector<1x1x128xf32>
    %41 = vector.shape_cast %40 : vector<1x1x128xf32> to vector<1x128xf32>
    %cst_37 = arith.constant dense<0.000000e+00> : vector<8x128xf32>
    %42 = tpu.matmul %37, %39, %cst_37 {dimension_numbers = #tpu.dot_dimension_numbers<[1], [0], [0], [1], [0, 0, 1, 1], [], []>} : vector<8x128xf32>, vector<128x128xf32>, vector<8x128xf32> -> vector<8x128xf32>
    %43 = vector.broadcast %41 : vector<1x128xf32> to vector<8x128xf32>
    %44 = arith.addf %42, %43 : vector<8x128xf32>
    %c0_38 = arith.constant 0 : index
    %c128 = arith.constant 128 : index
    %45 = vector.load %arg8[%c0_38, %c128] : memref<8x256xf32, #tpu.memory_space<vmem>>, vector<8x128xf32>
    tpu.vector_store %arg8[%c0_38, %c128], %44 {strides = array<i32>} : memref<8x256xf32, #tpu.memory_space<vmem>>, vector<8x128xf32>,
    return
  }
  func.func @transform_0(%arg0: i32) -> (i32, i32) {
    %c0_i32 = arith.constant 0 : i32
    %c0_i32_0 = arith.constant 0 : i32
    return %arg0, %c0_i32 : i32, i32
  }
  func.func @transform_1(%arg0: i32) -> (i32, i32) {
    %c0_i32 = arith.constant 0 : i32
    %c0_i32_0 = arith.constant 0 : i32
    %c0_i32_1 = arith.constant 0 : i32
    return %c0_i32, %c0_i32_0 : i32, i32
  }
  func.func @transform_2(%arg0: i32) -> (i32, i32) {
    %c0_i32 = arith.constant 0 : i32
    %c0_i32_0 = arith.constant 0 : i32
    %c0_i32_1 = arith.constant 0 : i32
    return %c0_i32, %c0_i32_0 : i32, i32
  }
  func.func @transform_3(%arg0: i32) -> (i32, i32, i32) {
    %c0_i32 = arith.constant 0 : i32
    %c0_i32_0 = arith.constant 0 : i32
    %c0_i32_1 = arith.constant 0 : i32
    %c0_i32_2 = arith.constant 0 : i32
    return %c0_i32, %c0_i32_0, %c0_i32_1 : i32, i32, i32
  }
  func.func @transform_4(%arg0: i32) -> (i32, i32, i32) {
    %c0_i32 = arith.constant 0 : i32
    %c0_i32_0 = arith.constant 0 : i32
    %c0_i32_1 = arith.constant 0 : i32
    %c0_i32_2 = arith.constant 0 : i32
    return %c0_i32, %c0_i32_0, %c0_i32_1 : i32, i32, i32
  }
  func.func @transform_5(%arg0: i32) -> (i32, i32, i32) {
    %c0_i32 = arith.constant 0 : i32
    %c0_i32_0 = arith.constant 0 : i32
    %c0_i32_1 = arith.constant 0 : i32
    %c0_i32_2 = arith.constant 0 : i32
    return %c0_i32, %c0_i32_0, %c0_i32_1 : i32, i32, i32
  }
  func.func @transform_6(%arg0: i32) -> (i32, i32, i32) {
    %c0_i32 = arith.constant 0 : i32
    %c0_i32_0 = arith.constant 0 : i32
    %c0_i32_1 = arith.constant 0 : i32
    %c0_i32_2 = arith.constant 0 : i32
    return %c0_i32, %c0_i32_0, %c0_i32_1 : i32, i32, i32
  }
  func.func @transform_7(%arg0: i32) -> (i32, i32) {
    %c0_i32 = arith.constant 0 : i32
    %c0_i32_0 = arith.constant 0 : i32
    return %arg0, %c0_i32 : i32, i32
  }
}

</mosaic_0001>

<llo_original>
// kernel: tpu_custom_call.1
$region0: #{tpu_custom_call.1}
  #allocation0 [shape = 'u32[]', space=smem, size = 0x4, offset = 0x4, fixed_abs, tag = 'smem constant byte address 0x4 - core index']
  #allocation1 [shape = 'u32[144,128]{1,0:T(1,128)}', space=vmem, size = 0x12000, scoped, tag = 'internal scratch']
  %s0 = inlined_call_operand.hbm [shape: f32[16,32], index: 0, kind: input, shape index: {}]
  %s1 = inlined_call_operand.hbm [shape: f32[32,256], index: 1, kind: input, shape index: {}]
  %s2 = inlined_call_operand.vmem [shape: f32[1,256], index: 2, kind: input, shape index: {}]
  %s3 = inlined_call_operand.hbm [shape: f32[2,128,128], index: 3, kind: input, shape index: {}]
  %s4 = inlined_call_operand.vmem [shape: f32[2,1,128], index: 4, kind: input, shape index: {}]
  %s5 = inlined_call_operand.hbm [shape: f32[2,128,128], index: 5, kind: input, shape index: {}]
  %s6 = inlined_call_operand.vmem [shape: f32[2,1,128], index: 6, kind: input, shape index: {}]
  %s7 = inlined_call_operand.hbm [shape: f32[16,256], index: 7, kind: output, shape index: {}]
  %s8 = sld [smem:[#allocation0]]
  $region77: #{tpu_custom_call.1} parent=0
    _
  %s10 = ssub.s32 1, %s8
  %s11 = scalar_select 0, %s10, %s8
  $region1: #{tpu_custom_call.1} parent=0
    #allocation2 [shape = 'u8[8192]{0}', space=vmem, size = 0x2000, scoped, tag = 'input window, operand 0']
    #allocation3 [shape = 's32[2]{0}', space=sflag, size = 0x8, scoped, tag = 'scoped memory for tpu_custom_call.1']
    #allocation4 [shape = 's32[2]{0}', space=sflag, size = 0x8, scoped, tag = 'scoped memory for tpu_custom_call.1']
    #allocation5 [shape = 'u8[32768]{0}', space=vmem, size = 0x8000, scoped, tag = 'input window, operand 1, single buffered']
    #allocation6 [shape = 's32[1]{0}', space=sflag, size = 0x4, scoped, tag = 'scoped memory for tpu_custom_call.1']
    #allocation7 [shape = 'u8[131072]{0}', space=vmem, size = 0x20000, scoped, tag = 'input window, operand 3, single buffered']
    #allocation8 [shape = 'u8[131072]{0}', space=vmem, size = 0x20000, scoped, tag = 'input window, operand 5, single buffered']
    #allocation9 [shape = 's32[1]{0}', space=sflag, size = 0x4, scoped, tag = 'scoped memory for tpu_custom_call.1']
    #allocation10 [shape = 'u8[16384]{0}', space=vmem, size = 0x4000, scoped, tag = 'output window, operand 0']
    %12 = vsyncpa [#allocation3], 0
    %s13 = scalar_lea.sflag [#allocation3], 1
    %14 = vsyncpa %s13, 0
    %15 = vsyncpa [#allocation6], 0
    %16 = vsyncpa [#allocation9], 0
    %17 = vsyncpa [#allocation4], 0
    %s18 = scalar_lea.sflag [#allocation4], 1
    %19 = vsyncpa %s18, 0
    loop: start=0, step=1, limit=4
    $region2: #{tpu_custom_call.1} parent=1 // loop_pre_header
      _
    $region3: #{tpu_custom_call.1} parent=1 // loop_header
      %s21 = sphi 0, %s25
      %p22 = scmp.ge.s32.totalorder %s21, 4
      %s31 = sphi 0, %s33
      %s34 = sphi 0, %s31
      %s35 = sphi 0, %s34
      %s51 = sphi 0, %s35
      %s55 = sphi 0, %s55
      %s57 = sphi 0, %s55
      %s58 = sphi 0, %s57
      %s72 = sphi 0, %s58
      %s76 = sphi 0, %s76
      %s78 = sphi 0, %s76
      %s79 = sphi 0, %s78
      %s93 = sphi 0, %s79
      %s97 = sphi 0, %s97
      %s99 = sphi 0, %s97
      %s100 = sphi 0, %s99
      %s114 = sphi 0, %s100
      %s118 = sphi 0, %s118
      %s120 = sphi 0, %s118
      %s121 = sphi 0, %s120
      %s135 = sphi 0, %s121
      %s139 = sphi 0, %s139
      %s141 = sphi 0, %s139
      %s142 = sphi 0, %s141
      %s156 = sphi 0, %s142
      %s160 = sphi 0, %s160
      %s162 = sphi 0, %s160
      %s163 = sphi 0, %s162
      %s177 = sphi 0, %s163
      %s183 = sphi 0, %s185
      %s186 = sphi 0, %s183
      %s187 = sphi 0, %s186
      %s203 = sphi 0, %s187
    $region4: #{tpu_custom_call.1} parent=1 // loop_header_branch
      %24 = sbr.rel (%p22) target = $region8
    $region5: #{tpu_custom_call.1} parent=1 // loop_body
      %s26 = ssub.s32 %s21, 1
      %s27 = ssub.s32 %s21, 2
      %s28 = sadd.s32 %s21, 1
      %s29 = ssub.s32 %s21, %s28
      %p30 = scmp.eq.s32.totalorder %s29, 0
      %s32 = sadd.s32 %s31, 1
      %s33 = scalar_select %p30, %s31, %s32
      %p36 = pneg %p30
      %p37 = scmp.eq.s32.totalorder %s21, 1
      %p38 = por %p36, %p37
      %p39 = scmp.ne.s32.totalorder %s31, %s34
      %p40 = scmp.eq.s32.totalorder %s21, 0
      %p41 = por %p39, %p40
      %p42 = scmp.ne.s32.totalorder %s31, %s34
      %p43 = scmp.eq.s32.totalorder %s26, 1
      %p44 = por %p42, %p43
      %p45 = scmp.ne.s32.totalorder %s34, %s35
      %p46 = scmp.eq.s32.totalorder %s26, 0
      %p47 = por %p45, %p46
      %p48 = scmp.ne.s32.totalorder %s34, %s35
      %p49 = scmp.eq.s32.totalorder %s27, 1
      %p50 = por %p48, %p49
      %p52 = scmp.ne.s32.totalorder %s35, %s51
      %p53 = scmp.eq.s32.totalorder %s27, 0
      %p54 = por %p52, %p53
      %s56 = sadd.s32 %s55, 1
      %p59 = scmp.eq.s32.totalorder %s21, 1
      %p60 = scmp.ne.s32.totalorder %s55, %s57
      %p61 = scmp.eq.s32.totalorder %s21, 0
      %p62 = por %p60, %p61
      %p63 = scmp.ne.s32.totalorder %s55, %s57
      %p64 = scmp.eq.s32.totalorder %s26, 1
      %p65 = por %p63, %p64
      %p66 = scmp.ne.s32.totalorder %s57, %s58
      %p67 = scmp.eq.s32.totalorder %s26, 0
      %p68 = por %p66, %p67
      %p69 = scmp.ne.s32.totalorder %s57, %s58
      %p70 = scmp.eq.s32.totalorder %s27, 1
      %p71 = por %p69, %p70
      %p73 = scmp.ne.s32.totalorder %s58, %s72
      %p74 = scmp.eq.s32.totalorder %s27, 0
      %p75 = por %p73, %p74
      %s77 = sadd.s32 %s76, 1
      %p80 = scmp.eq.s32.totalorder %s21, 1
      %p81 = scmp.ne.s32.totalorder %s76, %s78
      %p82 = scmp.eq.s32.totalorder %s21, 0
      %p83 = por %p81, %p82
      %p84 = scmp.ne.s32.totalorder %s76, %s78
      %p85 = scmp.eq.s32.totalorder %s26, 1
      %p86 = por %p84, %p85
      %p87 = scmp.ne.s32.totalorder %s78, %s79
      %p88 = scmp.eq.s32.totalorder %s26, 0
      %p89 = por %p87, %p88
      %p90 = scmp.ne.s32.totalorder %s78, %s79
      %p91 = scmp.eq.s32.totalorder %s27, 1
      %p92 = por %p90, %p91
      %p94 = scmp.ne.s32.totalorder %s79, %s93
      %p95 = scmp.eq.s32.totalorder %s27, 0
      %p96 = por %p94, %p95
      %s98 = sadd.s32 %s97, 1
      %p101 = scmp.eq.s32.totalorder %s21, 1
      %p102 = scmp.ne.s32.totalorder %s97, %s99
      %p103 = scmp.eq.s32.totalorder %s21, 0
      %p104 = por %p102, %p103
      %p105 = scmp.ne.s32.totalorder %s97, %s99
      %p106 = scmp.eq.s32.totalorder %s26, 1
      %p107 = por %p105, %p106
      %p108 = scmp.ne.s32.totalorder %s99, %s100
      %p109 = scmp.eq.s32.totalorder %s26, 0
      %p110 = por %p108, %p109
      %p111 = scmp.ne.s32.totalorder %s99, %s100
      %p112 = scmp.eq.s32.totalorder %s27, 1
      %p113 = por %p111, %p112
      %p115 = scmp.ne.s32.totalorder %s100, %s114
      %p116 = scmp.eq.s32.totalorder %s27, 0
      %p117 = por %p115, %p116
      %s119 = sadd.s32 %s118, 1
      %p122 = scmp.eq.s32.totalorder %s21, 1
      %p123 = scmp.ne.s32.totalorder %s118, %s120
      %p124 = scmp.eq.s32.totalorder %s21, 0
      %p125 = por %p123, %p124
      %p126 = scmp.ne.s32.totalorder %s118, %s120
      %p127 = scmp.eq.s32.totalorder %s26, 1
      %p128 = por %p126, %p127
      %p129 = scmp.ne.s32.totalorder %s120, %s121
      %p130 = scmp.eq.s32.totalorder %s26, 0
      %p131 = por %p129, %p130
      %p132 = scmp.ne.s32.totalorder %s120, %s121
      %p133 = scmp.eq.s32.totalorder %s27, 1
      %p134 = por %p132, %p133
      %p136 = scmp.ne.s32.totalorder %s121, %s135
      %p137 = scmp.eq.s32.totalorder %s27, 0
      %p138 = por %p136, %p137
      %s140 = sadd.s32 %s139, 1
      %p143 = scmp.eq.s32.totalorder %s21, 1
      %p144 = scmp.ne.s32.totalorder %s139, %s141
      %p145 = scmp.eq.s32.totalorder %s21, 0
      %p146 = por %p144, %p145
      %p147 = scmp.ne.s32.totalorder %s139, %s141
      %p148 = scmp.eq.s32.totalorder %s26, 1
      %p149 = por %p147, %p148
      %p150 = scmp.ne.s32.totalorder %s141, %s142
      %p151 = scmp.eq.s32.totalorder %s26, 0
      %p152 = por %p150, %p151
      %p153 = scmp.ne.s32.totalorder %s141, %s142
      %p154 = scmp.eq.s32.totalorder %s27, 1
      %p155 = por %p153, %p154
      %p157 = scmp.ne.s32.totalorder %s142, %s156
      %p158 = scmp.eq.s32.totalorder %s27, 0
      %p159 = por %p157, %p158
      %s161 = sadd.s32 %s160, 1
      %p164 = scmp.eq.s32.totalorder %s21, 1
      %p165 = scmp.ne.s32.totalorder %s160, %s162
      %p166 = scmp.eq.s32.totalorder %s21, 0
      %p167 = por %p165, %p166
      %p168 = scmp.ne.s32.totalorder %s160, %s162
      %p169 = scmp.eq.s32.totalorder %s26, 1
      %p170 = por %p168, %p169
      %p171 = scmp.ne.s32.totalorder %s162, %s163
      %p172 = scmp.eq.s32.totalorder %s26, 0
      %p173 = por %p171, %p172
      %p174 = scmp.ne.s32.totalorder %s162, %s163
      %p175 = scmp.eq.s32.totalorder %s27, 1
      %p176 = por %p174, %p175
      %p178 = scmp.ne.s32.totalorder %s163, %s177
      %p179 = scmp.eq.s32.totalorder %s27, 0
      %p180 = por %p178, %p179
      %s181 = ssub.s32 %s21, %s28
      %p182 = scmp.eq.s32.totalorder %s181, 0
      %s184 = sadd.s32 %s183, 1
      %s185 = scalar_select %p182, %s183, %s184
      %p188 = pneg %p182
      %p189 = scmp.eq.s32.totalorder %s21, 1
      %p190 = por %p188, %p189
      %p191 = scmp.ne.s32.totalorder %s183, %s186
      %p192 = scmp.eq.s32.totalorder %s21, 0
      %p193 = por %p191, %p192
      %p194 = scmp.ne.s32.totalorder %s183, %s186
      %p195 = scmp.eq.s32.totalorder %s26, 1
      %p196 = por %p194, %p195
      %p197 = scmp.ne.s32.totalorder %s186, %s187
      %p198 = scmp.eq.s32.totalorder %s26, 0
      %p199 = por %p197, %p198
      %p200 = scmp.ne.s32.totalorder %s186, %s187
      %p201 = scmp.eq.s32.totalorder %s27, 1
      %p202 = por %p200, %p201
      %p204 = scmp.ne.s32.totalorder %s187, %s203
      %p205 = scmp.eq.s32.totalorder %s27, 0
      %p206 = por %p204, %p205
      %p207 = scmp.le.s32.totalorder 1, %s21
      %p208 = scmp.lt.s32.totalorder %s21, 3
      %p209 = pnand %p207, %p208
      %p210 = pneg %p209
      // Predicated region
      $region9: #{tpu_custom_call.1} parent=5 // pred_check
        _
      $region10: #{tpu_custom_call.1} parent=5 // pred_check_branch
        %212 = sbr.rel (%p209) target = $region12
      $region11: #{tpu_custom_call.1} parent=5 // pred_region
        %s213 = ssub.s32 %s21, 1
        // Predicated region
        $region13: #{tpu_custom_call.1} parent=11 // pred_check
          %p214 = pneg %p68
        $region14: #{tpu_custom_call.1} parent=11 // pred_check_branch
          %216 = sbr.rel (%p214) target = $region16
        $region15: #{tpu_custom_call.1} parent=11 // pred_region
          %s218 = ssub.s32 1024, 1024
          %219 = vsyncadd [#allocation6], %s218
          %s220 = sshll.u32 [#allocation5], 4
          %s221 = int_to_ptr.vmem [resolvable:$true] %s220
          %226 = dma.hbm_to_vmem [thread:$0]  %s1, 1024, %s221, [#allocation6], 256, 256, 16
        $region16: #{tpu_custom_call.1} parent=11 // pred_fallthru
          _
        // Predicated region
        $region17: #{tpu_custom_call.1} parent=11 // pred_check
          %p227 = pneg %p89
        $region18: #{tpu_custom_call.1} parent=11 // pred_check_branch
          %229 = sbr.rel (%p227) target = $region20
        $region19: #{tpu_custom_call.1} parent=11 // pred_region
          _
        $region20: #{tpu_custom_call.1} parent=11 // pred_fallthru
          _
        // Predicated region
        $region21: #{tpu_custom_call.1} parent=11 // pred_check
          %p230 = pneg %p110
        $region22: #{tpu_custom_call.1} parent=11 // pred_check_branch
          %232 = sbr.rel (%p230) target = $region24
        $region23: #{tpu_custom_call.1} parent=11 // pred_region
          %s234 = ssub.s32 4096, 4096
          %235 = vsyncadd [#allocation6], %s234
          %s236 = sshll.u32 [#allocation7], 4
          %s237 = int_to_ptr.vmem [resolvable:$true] %s236
          %242 = dma.hbm_to_vmem [thread:$0]  %s3, 4096, %s237, [#allocation6], 128, 128, 8
        $region24: #{tpu_custom_call.1} parent=11 // pred_fallthru
          _
        // Predicated region
        $region25: #{tpu_custom_call.1} parent=11 // pred_check
          %p243 = pneg %p131
        $region26: #{tpu_custom_call.1} parent=11 // pred_check_branch
          %245 = sbr.rel (%p243) target = $region28
        $region27: #{tpu_custom_call.1} parent=11 // pred_region
          _
        $region28: #{tpu_custom_call.1} parent=11 // pred_fallthru
          _
        // Predicated region
        $region29: #{tpu_custom_call.1} parent=11 // pred_check
          %p246 = pneg %p152
        $region30: #{tpu_custom_call.1} parent=11 // pred_check_branch
          %248 = sbr.rel (%p246) target = $region32
        $region31: #{tpu_custom_call.1} parent=11 // pred_region
          %s250 = ssub.s32 4096, 4096
          %251 = vsyncadd [#allocation9], %s250
          %s252 = sshll.u32 [#allocation8], 4
          %s253 = int_to_ptr.vmem [resolvable:$true] %s252
          %258 = dma.hbm_to_vmem [thread:$0]  %s5, 4096, %s253, [#allocation9], 128, 128, 8
        $region32: #{tpu_custom_call.1} parent=11 // pred_fallthru
          _
        // Predicated region
        $region33: #{tpu_custom_call.1} parent=11 // pred_check
          %p259 = pneg %p173
        $region34: #{tpu_custom_call.1} parent=11 // pred_check_branch
          %261 = sbr.rel (%p259) target = $region36
        $region35: #{tpu_custom_call.1} parent=11 // pred_region
          _
        $region36: #{tpu_custom_call.1} parent=11 // pred_fallthru
          _
      $region12: #{tpu_custom_call.1} parent=5 // pred_fallthru
        _
      %p262 = scmp.lt.s32.totalorder %s21, 2
      // Predicated region
      $region37: #{tpu_custom_call.1} parent=5 // pred_check
        %p263 = pneg %p262
      $region38: #{tpu_custom_call.1} parent=5 // pred_check_branch
        %265 = sbr.rel (%p263) target = $region40
      $region39: #{tpu_custom_call.1} parent=5 // pred_region
        // Predicated region
        $region41: #{tpu_custom_call.1} parent=39 // pred_check
          %p266 = pneg %p41
        $region42: #{tpu_custom_call.1} parent=39 // pred_check_branch
          %268 = sbr.rel (%p266) target = $region44
        $region43: #{tpu_custom_call.1} parent=39 // pred_region
          %s269 = sand.u32 %s31, 1
          %s270 = scalar_lea.sflag [#allocation3], %s269
          %s271 = sand.u32 %s31, 1
          %s272 = smul.addr %s271, 8
          %s273 = scalar_lea.vmem [#allocation2], %s272
          %s275 = ssub.s32 128, 128
          %276 = vsyncadd %s270, %s275
          %s277 = smul.addr %s21, 128
          %s278 = scalar_lea.hbm %s0, %s277
          %s280 = sshll.u32 %s273, 4
          %s281 = int_to_ptr.vmem [resolvable:$true] %s280
          %283 = dma.hbm_to_vmem [thread:$0]  %s278, 128, %s281, %s270
        $region44: #{tpu_custom_call.1} parent=39 // pred_fallthru
          _
      $region40: #{tpu_custom_call.1} parent=5 // pred_fallthru
        _
      %p284 = scmp.le.s32.totalorder 1, %s21
      %p285 = scmp.lt.s32.totalorder %s21, 3
      %p286 = pnand %p284, %p285
      %p287 = pneg %p286
      // Predicated region
      $region45: #{tpu_custom_call.1} parent=5 // pred_check
        _
      $region46: #{tpu_custom_call.1} parent=5 // pred_check_branch
        %289 = sbr.rel (%p286) target = $region48
      $region47: #{tpu_custom_call.1} parent=5 // pred_region
        %s290 = ssub.s32 %s21, 1
        %s291 = sand.u32 %s34, 1
        %s292 = scalar_lea.sflag [#allocation3], %s291
        %s293 = sand.u32 %s34, 1
        %s294 = smul.addr %s293, 8
        %s295 = scalar_lea.vmem [#allocation2], %s294
        // Predicated region
        $region49: #{tpu_custom_call.1} parent=47 // pred_check
          %p296 = pneg %p47
        $region50: #{tpu_custom_call.1} parent=47 // pred_check_branch
          %298 = sbr.rel (%p296) target = $region52
        $region51: #{tpu_custom_call.1} parent=47 // pred_region
          %299 = dma.done %s292, 128
        $region52: #{tpu_custom_call.1} parent=47 // pred_fallthru
          _
        // Predicated region
        $region53: #{tpu_custom_call.1} parent=47 // pred_check
          %p300 = pneg %p68
        $region54: #{tpu_custom_call.1} parent=47 // pred_check_branch
          %302 = sbr.rel (%p300) target = $region56
        $region55: #{tpu_custom_call.1} parent=47 // pred_region
          %303 = dma.done [#allocation6], 1024
        $region56: #{tpu_custom_call.1} parent=47 // pred_fallthru
          _
        // Predicated region
        $region57: #{tpu_custom_call.1} parent=47 // pred_check
          %p304 = pneg %p110
        $region58: #{tpu_custom_call.1} parent=47 // pred_check_branch
          %306 = sbr.rel (%p304) target = $region60
        $region59: #{tpu_custom_call.1} parent=47 // pred_region
          %307 = dma.done [#allocation6], 4096
        $region60: #{tpu_custom_call.1} parent=47 // pred_fallthru
          _
        // Predicated region
        $region61: #{tpu_custom_call.1} parent=47 // pred_check
          %p308 = pneg %p152
        $region62: #{tpu_custom_call.1} parent=47 // pred_check_branch
          %310 = sbr.rel (%p308) target = $region64
        $region63: #{tpu_custom_call.1} parent=47 // pred_region
          %311 = dma.done [#allocation9], 4096
        $region64: #{tpu_custom_call.1} parent=47 // pred_fallthru
          _
        %s312 = sand.u32 %s34, 1
        %s313 = scalar_lea.sflag [#allocation3], %s312
        %s314 = sand.u32 %s34, 1
        %s315 = smul.addr %s314, 8
        %s316 = scalar_lea.vmem [#allocation2], %s315
        %p317 = pneg %p47
        %p318 = pneg %p44
        %p319 = pneg %p68
        %p320 = pneg %p65
        %p321 = pneg %p89
        %p322 = pneg %p86
        %p323 = pneg %p110
        %p324 = pneg %p107
        %p325 = pneg %p131
        %p326 = pneg %p128
        %p327 = pneg %p152
        %p328 = pneg %p149
        %p329 = pneg %p173
        %p330 = pneg %p170
        %p331 = pneg %p199
        %p332 = pneg %p196
        %s333 = sand.u32 %s186, 1
        %s334 = scalar_lea.sflag [#allocation4], %s333
        %s335 = sand.u32 %s186, 1
        %s336 = smul.addr %s335, 16
        %s337 = scalar_lea.vmem [#allocation10], %s336
        %v338 = vld [vmem:[%s295] sm:$0xff]
        %v339 = vld [vmem:[#allocation5] sm:$0xff]
        %v340 = vld [vmem:[#allocation5 + $0x8] sm:$0xff]
        %v341 = vld [vmem:[#allocation5 + $0x10] sm:$0xff]
        %v342 = vld [vmem:[#allocation5 + $0x18] sm:$0xff]
        %v343 = vld [vmem:[#allocation5 + $0x20] sm:$0xff]
        %v344 = vld [vmem:[#allocation5 + $0x28] sm:$0xff]
        %v345 = vld [vmem:[#allocation5 + $0x30] sm:$0xff]
        %v346 = vld [vmem:[#allocation5 + $0x38] sm:$0xff]
        %v347 = vld [vmem:[%s2] sm:$0x3]
        %v349 = vlaneseq
        %v350 = vshrl.u32 %v349, 7
        %v351 = vsub.s32 0, %v350
        %v352 = vrot.slane %v347, %v351
        %v353 = vlaneseq
        %v354 = vshrl.u32 %v353, 7
        %v355 = vsub.s32 1, %v354
        %v356 = vrot.slane %v347, %v355
        %vm359 = vcmask 261120
        %v361 = vsel %vm359, %v338, 0
        %363 = vmatprep.subr.mxu0 %v340
        %364 = vmatpush1.msra.mxu0 %v339
        %365 = vmatprep.subr.mxu0 %v342
        %366 = vmatpush1.msra.mxu0 %v341
        %367 = vmatprep.subr.mxu0 %v344
        %368 = vmatpush1.msra.mxu0 %v343
        %369 = vmatprep.subr.mxu0 %v346
        %370 = vmatpush1.msra.mxu0 %v345
        %371 = vmatprep.subr.mxu0 0.0
        %372 = vmatpush1.msra.mxu0 0.0
        %373 = vmatprep.subr.mxu0 0.0
        %374 = vmatpush1.msra.mxu0 0.0
        %375 = vmatprep.subr.mxu0 0.0
        %376 = vmatpush1.msra.mxu0 0.0
        %377 = vmatprep.subr.mxu0 0.0
        %378 = vmatpush1.msra.mxu0 0.0
        %379 = vmatprep.subr.mxu0 0.0
        %380 = vmatpush1.msra.mxu0 0.0
        %381 = vmatprep.subr.mxu0 0.0
        %382 = vmatpush1.msra.mxu0 0.0
        %383 = vmatprep.subr.mxu0 0.0
        %384 = vmatpush1.msra.mxu0 0.0
        %385 = vmatprep.subr.mxu0 0.0
        %386 = vmatpush1.msra.mxu0 0.0
        %387 = vmatprep.subr.mxu0 0.0
        %388 = vmatpush1.msra.mxu0 0.0
        %389 = vmatprep.subr.mxu0 0.0
        %390 = vmatpush1.msra.mxu0 0.0
        %391 = vmatprep.subr.mxu0 0.0
        %392 = vmatpush1.msra.mxu0 0.0
        %393 = vmatprep.subr.mxu0 0.0
        %394 = vmatpush1.msra.mxu0 0.0
        %395 = vmatprep.subr.mxu0 0.0
        %396 = vmatpush1.msra.mxu0 0.0
        %397 = vmatprep.subr.mxu0 0.0
        %398 = vmatpush1.msra.mxu0 0.0
        %399 = vmatprep.subr.mxu0 0.0
        %400 = vmatpush1.msra.mxu0 0.0
        %401 = vmatprep.subr.mxu0 0.0
        %402 = vmatpush1.msra.mxu0 0.0
        %403 = vmatprep.subr.mxu0 0.0
        %404 = vmatpush1.msra.mxu0 0.0
        %405 = vmatprep.subr.mxu0 0.0
        %406 = vmatpush1.msra.mxu0 0.0
        %407 = vmatprep.subr.mxu0 0.0
        %408 = vmatpush1.msra.mxu0 0.0
        %409 = vmatprep.subr.mxu0 0.0
        %410 = vmatpush1.msra.mxu0 0.0
        %411 = vmatprep.subr.mxu0 0.0
        %412 = vmatpush1.msra.mxu0 0.0
        %413 = vmatprep.subr.mxu0 0.0
        %414 = vmatpush1.msra.mxu0 0.0
        %415 = vmatprep.subr.mxu0 0.0
        %416 = vmatpush1.msra.mxu0 0.0
        %417 = vmatprep.subr.mxu0 0.0
        %418 = vmatpush1.msra.mxu0 0.0
        %419 = vmatprep.subr.mxu0 0.0
        %420 = vmatpush1.msra.mxu0 0.0
        %421 = vmatprep.subr.mxu0 0.0
        %422 = vmatpush1.msra.mxu0 0.0
        %423 = vmatprep.subr.mxu0 0.0
        %424 = vmatpush1.msra.mxu0 0.0
        %425 = vmatprep.subr.mxu0 0.0
        %426 = vmatpush1.msra.mxu0 0.0
        %427 = vmatprep.mubr.f32.mxu0 0.0
        %428 = vmatmul.mubr.f32.gmra.mrb[0].mxu0 %v361
        %v429 = vpop.f32.mrb[0].mxu0
        %v430 = vadd.f32 %v352, %v429
        %v431 = vpop.f32.mrb[0].mxu0
        %v432 = vadd.f32 %v356, %v431
        %433 = vdwg.mxu0
        %v434 = vmax.f32 %v430, 0.0
        %v435 = vld [vmem:[#allocation7] sm:$0xff]
        %v436 = vld [vmem:[#allocation7 + $0x8] sm:$0xff]
        %v437 = vld [vmem:[#allocation7 + $0x10] sm:$0xff]
        %v438 = vld [vmem:[#allocation7 + $0x18] sm:$0xff]
        %v439 = vld [vmem:[#allocation7 + $0x20] sm:$0xff]
        %v440 = vld [vmem:[#allocation7 + $0x28] sm:$0xff]
        %v441 = vld [vmem:[#allocation7 + $0x30] sm:$0xff]
        %v442 = vld [vmem:[#allocation7 + $0x38] sm:$0xff]
        %v443 = vld [vmem:[#allocation7 + $0x40] sm:$0xff]
        %v444 = vld [vmem:[#allocation7 + $0x48] sm:$0xff]
        %v445 = vld [vmem:[#allocation7 + $0x50] sm:$0xff]
        %v446 = vld [vmem:[#allocation7 + $0x58] sm:$0xff]
        %v447 = vld [vmem:[#allocation7 + $0x60] sm:$0xff]
        %v448 = vld [vmem:[#allocation7 + $0x68] sm:$0xff]
        %v449 = vld [vmem:[#allocation7 + $0x70] sm:$0xff]
        %v450 = vld [vmem:[#allocation7 + $0x78] sm:$0xff]
        %v451 = vld [vmem:[%s4] sm:$0x1]
        %v453 = vlaneseq
        %v454 = vshrl.u32 %v453, 7
        %v455 = vsub.s32 0, %v454
        %v456 = vrot.slane %v451, %v455
        %458 = vmatprep.subr.mxu0 0.0
        %459 = vmatpush1.msra.mxu0 %v435
        %460 = vmatprep.subr.mxu0 0.0
        %461 = vmatpush1.msra.mxu0 %v436
        %462 = vmatprep.subr.mxu0 0.0
        %463 = vmatpush1.msra.mxu0 %v437
        %464 = vmatprep.subr.mxu0 0.0
        %465 = vmatpush1.msra.mxu0 %v438
        %466 = vmatprep.subr.mxu0 0.0
        %467 = vmatpush1.msra.mxu0 %v439
        %468 = vmatprep.subr.mxu0 0.0
        %469 = vmatpush1.msra.mxu0 %v440
        %470 = vmatprep.subr.mxu0 0.0
        %471 = vmatpush1.msra.mxu0 %v441
        %472 = vmatprep.subr.mxu0 0.0
        %473 = vmatpush1.msra.mxu0 %v442
        %474 = vmatprep.subr.mxu0 0.0
        %475 = vmatpush1.msra.mxu0 %v443
        %476 = vmatprep.subr.mxu0 0.0
        %477 = vmatpush1.msra.mxu0 %v444
        %478 = vmatprep.subr.mxu0 0.0
        %479 = vmatpush1.msra.mxu0 %v445
        %480 = vmatprep.subr.mxu0 0.0
        %481 = vmatpush1.msra.mxu0 %v446
        %482 = vmatprep.subr.mxu0 0.0
        %483 = vmatpush1.msra.mxu0 %v447
        %484 = vmatprep.subr.mxu0 0.0
        %485 = vmatpush1.msra.mxu0 %v448
        %486 = vmatprep.subr.mxu0 0.0
        %487 = vmatpush1.msra.mxu0 %v449
        %488 = vmatprep.subr.mxu0 0.0
        %489 = vmatpush1.msra.mxu0 %v450
        %490 = vmatprep.subr.mxu0 0.0
        %491 = vmatpush1.msra.mxu0 0.0
        %492 = vmatprep.subr.mxu0 0.0
        %493 = vmatpush1.msra.mxu0 0.0
        %494 = vmatprep.subr.mxu0 0.0
        %495 = vmatpush1.msra.mxu0 0.0
        %496 = vmatprep.subr.mxu0 0.0
        %497 = vmatpush1.msra.mxu0 0.0
        %498 = vmatprep.subr.mxu0 0.0
        %499 = vmatpush1.msra.mxu0 0.0
        %500 = vmatprep.subr.mxu0 0.0
        %501 = vmatpush1.msra.mxu0 0.0
        %502 = vmatprep.subr.mxu0 0.0
        %503 = vmatpush1.msra.mxu0 0.0
        %504 = vmatprep.subr.mxu0 0.0
        %505 = vmatpush1.msra.mxu0 0.0
        %506 = vmatprep.subr.mxu0 0.0
        %507 = vmatpush1.msra.mxu0 0.0
        %508 = vmatprep.subr.mxu0 0.0
        %509 = vmatpush1.msra.mxu0 0.0
        %510 = vmatprep.subr.mxu0 0.0
        %511 = vmatpush1.msra.mxu0 0.0
        %512 = vmatprep.subr.mxu0 0.0
        %513 = vmatpush1.msra.mxu0 0.0
        %514 = vmatprep.subr.mxu0 0.0
        %515 = vmatpush1.msra.mxu0 0.0
        %516 = vmatprep.subr.mxu0 0.0
        %517 = vmatpush1.msra.mxu0 0.0
        %518 = vmatprep.subr.mxu0 0.0
        %519 = vmatpush1.msra.mxu0 0.0
        %520 = vmatprep.subr.mxu0 0.0
        %521 = vmatpush1.msra.mxu0 0.0
        %522 = vmatprep.mubr.f32.mxu0 0.0
        %523 = vmatmul.mubr.f32.gmra.mrb[0].mxu0 %v434
        %v524 = vpop.f32.mrb[0].mxu0
        %v525 = vadd.f32 %v456, %v524
        %v526 = vpop.f32.mrb[0].mxu0
        %527 = vdwg.mxu0
        %v528 = vmax.f32 %v525, 0.0
        %v529 = vld [vmem:[#allocation8] sm:$0xff]
        %v530 = vld [vmem:[#allocation8 + $0x8] sm:$0xff]
        %v531 = vld [vmem:[#allocation8 + $0x10] sm:$0xff]
        %v532 = vld [vmem:[#allocation8 + $0x18] sm:$0xff]
        %v533 = vld [vmem:[#allocation8 + $0x20] sm:$0xff]
        %v534 = vld [vmem:[#allocation8 + $0x28] sm:$0xff]
        %v535 = vld [vmem:[#allocation8 + $0x30] sm:$0xff]
        %v536 = vld [vmem:[#allocation8 + $0x38] sm:$0xff]
        %v537 = vld [vmem:[#allocation8 + $0x40] sm:$0xff]
        %v538 = vld [vmem:[#allocation8 + $0x48] sm:$0xff]
        %v539 = vld [vmem:[#allocation8 + $0x50] sm:$0xff]
        %v540 = vld [vmem:[#allocation8 + $0x58] sm:$0xff]
        %v541 = vld [vmem:[#allocation8 + $0x60] sm:$0xff]
        %v542 = vld [vmem:[#allocation8 + $0x68] sm:$0xff]
        %v543 = vld [vmem:[#allocation8 + $0x70] sm:$0xff]
        %v544 = vld [vmem:[#allocation8 + $0x78] sm:$0xff]
        %v545 = vld [vmem:[%s6] sm:$0x1]
        %v547 = vlaneseq
        %v548 = vshrl.u32 %v547, 7
        %v549 = vsub.s32 0, %v548
        %v550 = vrot.slane %v545, %v549
        %552 = vmatprep.subr.mxu0 0.0
        %553 = vmatpush1.msra.mxu0 %v529
        %554 = vmatprep.subr.mxu0 0.0
        %555 = vmatpush1.msra.mxu0 %v530
        %556 = vmatprep.subr.mxu0 0.0
        %557 = vmatpush1.msra.mxu0 %v531
        %558 = vmatprep.subr.mxu0 0.0
        %559 = vmatpush1.msra.mxu0 %v532
        %560 = vmatprep.subr.mxu0 0.0
        %561 = vmatpush1.msra.mxu0 %v533
        %562 = vmatprep.subr.mxu0 0.0
        %563 = vmatpush1.msra.mxu0 %v534
        %564 = vmatprep.subr.mxu0 0.0
        %565 = vmatpush1.msra.mxu0 %v535
        %566 = vmatprep.subr.mxu0 0.0
        %567 = vmatpush1.msra.mxu0 %v536
        %568 = vmatprep.subr.mxu0 0.0
        %569 = vmatpush1.msra.mxu0 %v537
        %570 = vmatprep.subr.mxu0 0.0
        %571 = vmatpush1.msra.mxu0 %v538
        %572 = vmatprep.subr.mxu0 0.0
        %573 = vmatpush1.msra.mxu0 %v539
        %574 = vmatprep.subr.mxu0 0.0
        %575 = vmatpush1.msra.mxu0 %v540
        %576 = vmatprep.subr.mxu0 0.0
        %577 = vmatpush1.msra.mxu0 %v541
        %578 = vmatprep.subr.mxu0 0.0
        %579 = vmatpush1.msra.mxu0 %v542
        %580 = vmatprep.subr.mxu0 0.0
        %581 = vmatpush1.msra.mxu0 %v543
        %582 = vmatprep.subr.mxu0 0.0
        %583 = vmatpush1.msra.mxu0 %v544
        %584 = vmatprep.subr.mxu0 0.0
        %585 = vmatpush1.msra.mxu0 0.0
        %586 = vmatprep.subr.mxu0 0.0
        %587 = vmatpush1.msra.mxu0 0.0
        %588 = vmatprep.subr.mxu0 0.0
        %589 = vmatpush1.msra.mxu0 0.0
        %590 = vmatprep.subr.mxu0 0.0
        %591 = vmatpush1.msra.mxu0 0.0
        %592 = vmatprep.subr.mxu0 0.0
        %593 = vmatpush1.msra.mxu0 0.0
        %594 = vmatprep.subr.mxu0 0.0
        %595 = vmatpush1.msra.mxu0 0.0
        %596 = vmatprep.subr.mxu0 0.0
        %597 = vmatpush1.msra.mxu0 0.0
        %598 = vmatprep.subr.mxu0 0.0
        %599 = vmatpush1.msra.mxu0 0.0
        %600 = vmatprep.subr.mxu0 0.0
        %601 = vmatpush1.msra.mxu0 0.0
        %602 = vmatprep.subr.mxu0 0.0
        %603 = vmatpush1.msra.mxu0 0.0
        %604 = vmatprep.subr.mxu0 0.0
        %605 = vmatpush1.msra.mxu0 0.0
        %606 = vmatprep.subr.mxu0 0.0
        %607 = vmatpush1.msra.mxu0 0.0
        %608 = vmatprep.subr.mxu0 0.0
        %609 = vmatpush1.msra.mxu0 0.0
        %610 = vmatprep.subr.mxu0 0.0
        %611 = vmatpush1.msra.mxu0 0.0
        %612 = vmatprep.subr.mxu0 0.0
        %613 = vmatpush1.msra.mxu0 0.0
        %614 = vmatprep.subr.mxu0 0.0
        %615 = vmatpush1.msra.mxu0 0.0
        %616 = vmatprep.mubr.f32.mxu0 0.0
        %617 = vmatmul.mubr.f32.gmra.mrb[0].mxu0 %v528
        %v618 = vpop.f32.mrb[0].mxu0
        %v619 = vadd.f32 %v550, %v618
        %v620 = vpop.f32.mrb[0].mxu0
        %621 = vdwg.mxu0
        %622 = vst [vmem:[%s337] sm:$0xff] %v619
        %v623 = vmax.f32 %v432, 0.0
        %s624 = scalar_lea.vmem [#allocation7], 128
        %v625 = vld [vmem:[%s624] sm:$0xff]
        %v626 = vld [vmem:[%s624 + $0x8] sm:$0xff]
        %v627 = vld [vmem:[%s624 + $0x10] sm:$0xff]
        %v628 = vld [vmem:[%s624 + $0x18] sm:$0xff]
        %v629 = vld [vmem:[%s624 + $0x20] sm:$0xff]
        %v630 = vld [vmem:[%s624 + $0x28] sm:$0xff]
        %v631 = vld [vmem:[%s624 + $0x30] sm:$0xff]
        %v632 = vld [vmem:[%s624 + $0x38] sm:$0xff]
        %v633 = vld [vmem:[%s624 + $0x40] sm:$0xff]
        %v634 = vld [vmem:[%s624 + $0x48] sm:$0xff]
        %v635 = vld [vmem:[%s624 + $0x50] sm:$0xff]
        %v636 = vld [vmem:[%s624 + $0x58] sm:$0xff]
        %v637 = vld [vmem:[%s624 + $0x60] sm:$0xff]
        %v638 = vld [vmem:[%s624 + $0x68] sm:$0xff]
        %v639 = vld [vmem:[%s624 + $0x70] sm:$0xff]
        %v640 = vld [vmem:[%s624 + $0x78] sm:$0xff]
        %s641 = scalar_lea.vmem %s4, 1
        %v642 = vld [vmem:[%s641] sm:$0x1]
        %v644 = vlaneseq
        %v645 = vshrl.u32 %v644, 7
        %v646 = vsub.s32 0, %v645
        %v647 = vrot.slane %v642, %v646
        %649 = vmatprep.subr.mxu0 0.0
        %650 = vmatpush1.msra.mxu0 %v625
        %651 = vmatprep.subr.mxu0 0.0
        %652 = vmatpush1.msra.mxu0 %v626
        %653 = vmatprep.subr.mxu0 0.0
        %654 = vmatpush1.msra.mxu0 %v627
        %655 = vmatprep.subr.mxu0 0.0
        %656 = vmatpush1.msra.mxu0 %v628
        %657 = vmatprep.subr.mxu0 0.0
        %658 = vmatpush1.msra.mxu0 %v629
        %659 = vmatprep.subr.mxu0 0.0
        %660 = vmatpush1.msra.mxu0 %v630
        %661 = vmatprep.subr.mxu0 0.0
        %662 = vmatpush1.msra.mxu0 %v631
        %663 = vmatprep.subr.mxu0 0.0
        %664 = vmatpush1.msra.mxu0 %v632
        %665 = vmatprep.subr.mxu0 0.0
        %666 = vmatpush1.msra.mxu0 %v633
        %667 = vmatprep.subr.mxu0 0.0
        %668 = vmatpush1.msra.mxu0 %v634
        %669 = vmatprep.subr.mxu0 0.0
        %670 = vmatpush1.msra.mxu0 %v635
        %671 = vmatprep.subr.mxu0 0.0
        %672 = vmatpush1.msra.mxu0 %v636
        %673 = vmatprep.subr.mxu0 0.0
        %674 = vmatpush1.msra.mxu0 %v637
        %675 = vmatprep.subr.mxu0 0.0
        %676 = vmatpush1.msra.mxu0 %v638
        %677 = vmatprep.subr.mxu0 0.0
        %678 = vmatpush1.msra.mxu0 %v639
        %679 = vmatprep.subr.mxu0 0.0
        %680 = vmatpush1.msra.mxu0 %v640
        %681 = vmatprep.subr.mxu0 0.0
        %682 = vmatpush1.msra.mxu0 0.0
        %683 = vmatprep.subr.mxu0 0.0
        %684 = vmatpush1.msra.mxu0 0.0
        %685 = vmatprep.subr.mxu0 0.0
        %686 = vmatpush1.msra.mxu0 0.0
        %687 = vmatprep.subr.mxu0 0.0
        %688 = vmatpush1.msra.mxu0 0.0
        %689 = vmatprep.subr.mxu0 0.0
        %690 = vmatpush1.msra.mxu0 0.0
        %691 = vmatprep.subr.mxu0 0.0
        %692 = vmatpush1.msra.mxu0 0.0
        %693 = vmatprep.subr.mxu0 0.0
        %694 = vmatpush1.msra.mxu0 0.0
        %695 = vmatprep.subr.mxu0 0.0
        %696 = vmatpush1.msra.mxu0 0.0
        %697 = vmatprep.subr.mxu0 0.0
        %698 = vmatpush1.msra.mxu0 0.0
        %699 = vmatprep.subr.mxu0 0.0
        %700 = vmatpush1.msra.mxu0 0.0
        %701 = vmatprep.subr.mxu0 0.0
        %702 = vmatpush1.msra.mxu0 0.0
        %703 = vmatprep.subr.mxu0 0.0
        %704 = vmatpush1.msra.mxu0 0.0
        %705 = vmatprep.subr.mxu0 0.0
        %706 = vmatpush1.msra.mxu0 0.0
        %707 = vmatprep.subr.mxu0 0.0
        %708 = vmatpush1.msra.mxu0 0.0
        %709 = vmatprep.subr.mxu0 0.0
        %710 = vmatpush1.msra.mxu0 0.0
        %711 = vmatprep.subr.mxu0 0.0
        %712 = vmatpush1.msra.mxu0 0.0
        %713 = vmatprep.mubr.f32.mxu0 0.0
        %714 = vmatmul.mubr.f32.gmra.mrb[0].mxu0 %v623
        %v715 = vpop.f32.mrb[0].mxu0
        %v716 = vadd.f32 %v647, %v715
        %v717 = vpop.f32.mrb[0].mxu0
        %718 = vdwg.mxu0
        %v719 = vmax.f32 %v716, 0.0
        %s720 = scalar_lea.vmem [#allocation8], 128
        %v721 = vld [vmem:[%s720] sm:$0xff]
        %v722 = vld [vmem:[%s720 + $0x8] sm:$0xff]
        %v723 = vld [vmem:[%s720 + $0x10] sm:$0xff]
        %v724 = vld [vmem:[%s720 + $0x18] sm:$0xff]
        %v725 = vld [vmem:[%s720 + $0x20] sm:$0xff]
        %v726 = vld [vmem:[%s720 + $0x28] sm:$0xff]
        %v727 = vld [vmem:[%s720 + $0x30] sm:$0xff]
        %v728 = vld [vmem:[%s720 + $0x38] sm:$0xff]
        %v729 = vld [vmem:[%s720 + $0x40] sm:$0xff]
        %v730 = vld [vmem:[%s720 + $0x48] sm:$0xff]
        %v731 = vld [vmem:[%s720 + $0x50] sm:$0xff]
        %v732 = vld [vmem:[%s720 + $0x58] sm:$0xff]
        %v733 = vld [vmem:[%s720 + $0x60] sm:$0xff]
        %v734 = vld [vmem:[%s720 + $0x68] sm:$0xff]
        %v735 = vld [vmem:[%s720 + $0x70] sm:$0xff]
        %v736 = vld [vmem:[%s720 + $0x78] sm:$0xff]
        %s737 = scalar_lea.vmem %s6, 1
        %v738 = vld [vmem:[%s737] sm:$0x1]
        %v740 = vlaneseq
        %v741 = vshrl.u32 %v740, 7
        %v742 = vsub.s32 0, %v741
        %v743 = vrot.slane %v738, %v742
        %745 = vmatprep.subr.mxu0 0.0
        %746 = vmatpush1.msra.mxu0 %v721
        %747 = vmatprep.subr.mxu0 0.0
        %748 = vmatpush1.msra.mxu0 %v722
        %749 = vmatprep.subr.mxu0 0.0
        %750 = vmatpush1.msra.mxu0 %v723
        %751 = vmatprep.subr.mxu0 0.0
        %752 = vmatpush1.msra.mxu0 %v724
        %753 = vmatprep.subr.mxu0 0.0
        %754 = vmatpush1.msra.mxu0 %v725
        %755 = vmatprep.subr.mxu0 0.0
        %756 = vmatpush1.msra.mxu0 %v726
        %757 = vmatprep.subr.mxu0 0.0
        %758 = vmatpush1.msra.mxu0 %v727
        %759 = vmatprep.subr.mxu0 0.0
        %760 = vmatpush1.msra.mxu0 %v728
        %761 = vmatprep.subr.mxu0 0.0
        %762 = vmatpush1.msra.mxu0 %v729
        %763 = vmatprep.subr.mxu0 0.0
        %764 = vmatpush1.msra.mxu0 %v730
        %765 = vmatprep.subr.mxu0 0.0
        %766 = vmatpush1.msra.mxu0 %v731
        %767 = vmatprep.subr.mxu0 0.0
        %768 = vmatpush1.msra.mxu0 %v732
        %769 = vmatprep.subr.mxu0 0.0
        %770 = vmatpush1.msra.mxu0 %v733
        %771 = vmatprep.subr.mxu0 0.0
        %772 = vmatpush1.msra.mxu0 %v734
        %773 = vmatprep.subr.mxu0 0.0
        %774 = vmatpush1.msra.mxu0 %v735
        %775 = vmatprep.subr.mxu0 0.0
        %776 = vmatpush1.msra.mxu0 %v736
        %777 = vmatprep.subr.mxu0 0.0
        %778 = vmatpush1.msra.mxu0 0.0
        %779 = vmatprep.subr.mxu0 0.0
        %780 = vmatpush1.msra.mxu0 0.0
        %781 = vmatprep.subr.mxu0 0.0
        %782 = vmatpush1.msra.mxu0 0.0
        %783 = vmatprep.subr.mxu0 0.0
        %784 = vmatpush1.msra.mxu0 0.0
        %785 = vmatprep.subr.mxu0 0.0
        %786 = vmatpush1.msra.mxu0 0.0
        %787 = vmatprep.subr.mxu0 0.0
        %788 = vmatpush1.msra.mxu0 0.0
        %789 = vmatprep.subr.mxu0 0.0
        %790 = vmatpush1.msra.mxu0 0.0
        %791 = vmatprep.subr.mxu0 0.0
        %792 = vmatpush1.msra.mxu0 0.0
        %793 = vmatprep.subr.mxu0 0.0
        %794 = vmatpush1.msra.mxu0 0.0
        %795 = vmatprep.subr.mxu0 0.0
        %796 = vmatpush1.msra.mxu0 0.0
        %797 = vmatprep.subr.mxu0 0.0
        %798 = vmatpush1.msra.mxu0 0.0
        %799 = vmatprep.subr.mxu0 0.0
        %800 = vmatpush1.msra.mxu0 0.0
        %801 = vmatprep.subr.mxu0 0.0
        %802 = vmatpush1.msra.mxu0 0.0
        %803 = vmatprep.subr.mxu0 0.0
        %804 = vmatpush1.msra.mxu0 0.0
        %805 = vmatprep.subr.mxu0 0.0
        %806 = vmatpush1.msra.mxu0 0.0
        %807 = vmatprep.subr.mxu0 0.0
        %808 = vmatpush1.msra.mxu0 0.0
        %809 = vmatprep.mubr.f32.mxu0 0.0
        %810 = vmatmul.mubr.f32.gmra.mrb[0].mxu0 %v719
        %v811 = vpop.f32.mrb[0].mxu0
        %v812 = vadd.f32 %v743, %v811
        %v813 = vpop.f32.mrb[0].mxu0
        %814 = vdwg.mxu0
        %815 = vst [vmem:[%s337 + $0x8] sm:$0xff] %v812
        %s816 = sand.u32 %s186, 1
        %s817 = scalar_lea.sflag [#allocation4], %s816
        %s818 = sand.u32 %s186, 1
        %s819 = smul.addr %s818, 16
        %s820 = scalar_lea.vmem [#allocation10], %s819
        // Predicated region
        $region65: #{tpu_custom_call.1} parent=47 // pred_check
          %p821 = pneg %p196
        $region66: #{tpu_custom_call.1} parent=47 // pred_check_branch
          %823 = sbr.rel (%p821) target = $region68
        $region67: #{tpu_custom_call.1} parent=47 // pred_region
          %s825 = ssub.s32 256, 256
          %826 = vsyncadd %s817, %s825
          %s827 = smul.addr %s26, 2
          %s828 = smul.addr %s827, 128
          %s829 = scalar_lea.hbm %s7, %s828
          %s831 = sshll.u32 %s820, 4
          %s832 = int_to_ptr.vmem [resolvable:$true] %s831
          %834 = dma.vmem_to_hbm [thread:$0]  %s832, 256, %s829, %s817
        $region68: #{tpu_custom_call.1} parent=47 // pred_fallthru
          _
      $region48: #{tpu_custom_call.1} parent=5 // pred_fallthru
        _
      %p835 = scmp.le.s32.totalorder 2, %s21
      // Predicated region
      $region69: #{tpu_custom_call.1} parent=5 // pred_check
        %p836 = pneg %p835
      $region70: #{tpu_custom_call.1} parent=5 // pred_check_branch
        %838 = sbr.rel (%p836) target = $region72
      $region71: #{tpu_custom_call.1} parent=5 // pred_region
        %s839 = ssub.s32 %s21, 2
        // Predicated region
        $region73: #{tpu_custom_call.1} parent=71 // pred_check
          %p840 = pneg %p202
        $region74: #{tpu_custom_call.1} parent=71 // pred_check_branch
          %842 = sbr.rel (%p840) target = $region76
        $region75: #{tpu_custom_call.1} parent=71 // pred_region
          %s843 = sand.u32 %s187, 1
          %s844 = scalar_lea.sflag [#allocation4], %s843
          %s845 = sand.u32 %s187, 1
          %s846 = smul.addr %s845, 16
          %s847 = scalar_lea.vmem [#allocation10], %s846
          %848 = dma.done %s844, 256
        $region76: #{tpu_custom_call.1} parent=71 // pred_fallthru
          _
      $region72: #{tpu_custom_call.1} parent=5 // pred_fallthru
        _
    $region6: #{tpu_custom_call.1} parent=1 // loop_footer
      %s25 = sadd.s32 1, %s21
    $region7: #{tpu_custom_call.1} parent=1 // loop_footer_branch
      %20 = sbr.rel target = $region3
    $region8: #{tpu_custom_call.1} parent=1 // loop_exit
      _
    %849 = vsyncpa [#allocation3], 1
    %s850 = scalar_lea.sflag [#allocation3], 1
    %851 = vsyncpa %s850, 1
    %852 = vsyncpa [#allocation6], 1
    %853 = vsyncpa [#allocation9], 1
    %854 = vsyncpa [#allocation4], 1
    %s855 = scalar_lea.sflag [#allocation4], 1
    %856 = vsyncpa %s855, 1

</llo_original>
